<compile_context>
chip_gen: v7x
topology: tpu7x:2x2x1
jax: 0.10.0
libtpu: 0.0.40
codegen_flags: <defaults>
</compile_context>

<pallas_src>
import numpy as np
import jax
import jax.numpy as jnp
from jax import lax
from jax.experimental import pallas as pl
from jax.experimental.pallas import tpu as pltpu


def _round_up(x, m):
    return ((x + m - 1) // m) * m


# ----------------------------------------------------------------------------
# In-kernel fused GRU step (torch.nn.GRU semantics, gate order r, z, n)
# Weights: wih [in, 3H], whh [H, 3H]; biases [1, 3H].
# ----------------------------------------------------------------------------
def _gru_step(x, h, wih_ref, whh_ref, bih_ref, bhh_ref):
    H = h.shape[-1]
    gi = jnp.dot(x, wih_ref[...], preferred_element_type=jnp.float32) + bih_ref[...]
    gh = jnp.dot(h, whh_ref[...], preferred_element_type=jnp.float32) + bhh_ref[...]
    r = jax.nn.sigmoid(gi[:, :H] + gh[:, :H])
    z = jax.nn.sigmoid(gi[:, H:2 * H] + gh[:, H:2 * H])
    n = jnp.tanh(gi[:, 2 * H:] + r * gh[:, 2 * H:])
    return n + z * (h - n)          # == (1-z)*n + z*h


# ----------------------------------------------------------------------------
# Pallas kernels
# ----------------------------------------------------------------------------
def gru_last_hidden_kernel(x_ref, len_ref, wih_ref, whh_ref, bih_ref, bhh_ref,
                           h_ref):
    """Word-level EncoderRNN: final (length-masked) hidden state.

    grid=(T,). h_ref is the VMEM-resident output block and doubles as the carry.
    """
    t = pl.program_id(0)

    @pl.when(t == 0)
    def _():
        h_ref[...] = jnp.zeros_like(h_ref)

    h = h_ref[...]
    h_new = _gru_step(x_ref[0], h, wih_ref, whh_ref, bih_ref, bhh_ref)
    m = (t < len_ref[...]).astype(jnp.float32)        # [B, 1]
    h_ref[...] = h + m * (h_new - h)


def gru_all_outputs_kernel(x_ref, len_ref, wih_ref, whh_ref, bih_ref, bhh_ref,
                           hs_ref, h_scr):
    """ContextRNN: hidden state at every step. grid=(T,), carry in VMEM scratch."""
    t = pl.program_id(0)

    @pl.when(t == 0)
    def _():
        h_scr[...] = jnp.zeros_like(h_scr)

    h = h_scr[...]
    h_new = _gru_step(x_ref[0], h, wih_ref, whh_ref, bih_ref, bhh_ref)
    m = (t < len_ref[...]).astype(jnp.float32)
    h = h + m * (h_new - h)
    h_scr[...] = h
    hs_ref[0] = h


def decoder_hidden_kernel(x_ref, h0_ref, wih_ref, whh_ref, bih_ref, bhh_ref,
                          hs_ref, h_scr):
    """DecoderRNN (teacher forcing): emits hidden states only; the vocab
    projection is done by a separate tiled matmul kernel."""
    t = pl.program_id(0)

    @pl.when(t == 0)
    def _():
        h_scr[...] = h0_ref[...]

    h = _gru_step(x_ref[0], h_scr[...], wih_ref, whh_ref, bih_ref, bhh_ref)
    h_scr[...] = h
    hs_ref[0] = h


def linear_tanh_kernel(x_ref, w_ref, b_ref, o_ref):
    """context2decoder FeedForward: tanh(x @ W + b) (small, whole-block)."""
    o_ref[...] = jnp.tanh(
        jnp.dot(x_ref[...], w_ref[...], preferred_element_type=jnp.float32)
        + b_ref[...])


def vocab_proj_kernel(hs_ref, w_ref, b_ref, o_ref):
    """Tiled vocab projection: bf16 inputs, f32 accumulation."""
    o_ref[...] = (
        jnp.dot(hs_ref[...], w_ref[...], preferred_element_type=jnp.float32)
        + b_ref[...]).astype(o_ref.dtype)


# ----------------------------------------------------------------------------
# pallas_call wrappers
# ----------------------------------------------------------------------------
def _weight_specs(E, H):
    return [
        pl.BlockSpec((E, 3 * H), lambda t: (0, 0)),
        pl.BlockSpec((H, 3 * H), lambda t: (0, 0)),
        pl.BlockSpec((1, 3 * H), lambda t: (0, 0)),
        pl.BlockSpec((1, 3 * H), lambda t: (0, 0)),
    ]


def gru_last_hidden(x_tbe, lengths_b1, wih, whh, bih, bhh):
    T, B, E = x_tbe.shape
    H = whh.shape[0]
    return pl.pallas_call(
        gru_last_hidden_kernel,
        out_shape=jax.ShapeDtypeStruct((B, H), jnp.float32),
        grid=(T,),
        in_specs=[pl.BlockSpec((1, B, E), lambda t: (t, 0, 0)),
                  pl.BlockSpec((B, 1), lambda t: (0, 0))] + _weight_specs(E, H),
        out_specs=pl.BlockSpec((B, H), lambda t: (0, 0)),
        compiler_params=pltpu.CompilerParams(
            dimension_semantics=("arbitrary",)),
    )(x_tbe, lengths_b1, wih, whh, bih, bhh)


def gru_all_outputs(x_tbe, lengths_b1, wih, whh, bih, bhh):
    T, B, E = x_tbe.shape
    H = whh.shape[0]
    return pl.pallas_call(
        gru_all_outputs_kernel,
        out_shape=jax.ShapeDtypeStruct((T, B, H), jnp.float32),
        grid=(T,),
        in_specs=[pl.BlockSpec((1, B, E), lambda t: (t, 0, 0)),
                  pl.BlockSpec((B, 1), lambda t: (0, 0))] + _weight_specs(E, H),
        out_specs=pl.BlockSpec((1, B, H), lambda t: (t, 0, 0)),
        scratch_shapes=[pltpu.VMEM((B, H), jnp.float32)],
        compiler_params=pltpu.CompilerParams(
            dimension_semantics=("arbitrary",)),
    )(x_tbe, lengths_b1, wih, whh, bih, bhh)


def decoder_hidden(x_tbe, h0, wih, whh, bih, bhh):
    T, B, E = x_tbe.shape
    H = whh.shape[0]
    return pl.pallas_call(
        decoder_hidden_kernel,
        out_shape=jax.ShapeDtypeStruct((T, B, H), jnp.float32),
        grid=(T,),
        in_specs=[pl.BlockSpec((1, B, E), lambda t: (t, 0, 0)),
                  pl.BlockSpec((B, H), lambda t: (0, 0))] + _weight_specs(E, H),
        out_specs=pl.BlockSpec((1, B, H), lambda t: (t, 0, 0)),
        scratch_shapes=[pltpu.VMEM((B, H), jnp.float32)],
        compiler_params=pltpu.CompilerParams(
            dimension_semantics=("arbitrary",)),
    )(x_tbe, h0, wih, whh, bih, bhh)


def linear_tanh(x, w, b):
    B = x.shape[0]
    N = w.shape[1]
    vmem = pl.BlockSpec(memory_space=pltpu.MemorySpace.VMEM)
    return pl.pallas_call(
        linear_tanh_kernel,
        out_shape=jax.ShapeDtypeStruct((B, N), jnp.float32),
        in_specs=[vmem, vmem, vmem],
        out_specs=vmem,
    )(x, w, b)


def vocab_projection(hs, w, b, *, tn=256):
    """hs [R, H] @ w [H, V] + b, tiled over (rows, vocab), bf16 MXU, f32 acc."""
    R, H = hs.shape
    V = w.shape[1]
    tm = 128 if R >= 128 else _round_up(R, 8)
    R_pad = _round_up(R, tm)
    tn = min(tn, _round_up(V, 128))
    V_pad = _round_up(V, tn)

    hs_p = jnp.pad(hs, ((0, R_pad - R), (0, 0))).astype(jnp.bfloat16)
    w_p = jnp.pad(w, ((0, 0), (0, V_pad - V))).astype(jnp.bfloat16)
    b_p = jnp.pad(b, ((0, 0), (0, V_pad - V)))

    out = pl.pallas_call(
        vocab_proj_kernel,
        out_shape=jax.ShapeDtypeStruct((R_pad, V_pad), jnp.float32),
        grid=(R_pad // tm, V_pad // tn),
        in_specs=[pl.BlockSpec((tm, H), lambda i, j: (i, 0)),
                  pl.BlockSpec((H, tn), lambda i, j: (0, j)),
                  pl.BlockSpec((1, tn), lambda i, j: (0, j))],
        out_specs=pl.BlockSpec((tm, tn), lambda i, j: (i, j)),
        compiler_params=pltpu.CompilerParams(
            dimension_semantics=("parallel", "parallel")),
    )(hs_p, w_p, b_p)
    return out[:R, :V]


# ----------------------------------------------------------------------------
# HRED forward (glue in plain JAX, hot paths in Pallas)
# ----------------------------------------------------------------------------
def hred_forward(params, input_sentences, input_sentence_length,
                 conv_lengths_static, target_sentences):
    """
    input_sentences:       [N, T] int32  (N = total sentences across convs)
    input_sentence_length: [N] int32
    conv_lengths_static:   python list of ints (sums to N)
    target_sentences:      [N, T] int32
    returns decoder logits [N, T, vocab_size]
    """
    emb = params["embedding"]                            # [V, E] (tied enc/dec)
    N, T = input_sentences.shape
    H_enc = params["enc_whh"].shape[0]
    C = params["ctx_whh"].shape[0]
    H_dec = params["dec_whh"].shape[0]
    V = emb.shape[0]

    # pad the sentence batch to a multiple of 8 (sublane alignment)
    N_pad = _round_up(N, 8)
    pad_n = N_pad - N
    inp = jnp.pad(input_sentences, ((0, pad_n), (0, 0)))
    tgt = jnp.pad(target_sentences, ((0, pad_n), (0, 0)))
    lens = jnp.pad(input_sentence_length.astype(jnp.int32), (0, pad_n))

    # --- word-level encoder ---
    x_enc = jnp.transpose(emb[inp], (1, 0, 2))           # [T, N_pad, E]
    enc_h = gru_last_hidden(
        x_enc, lens[:, None],
        params["enc_wih"], params["enc_whh"],
        params["enc_bih"], params["enc_bhh"])            # [N_pad, H_enc]
    enc_h = enc_h[:N]

    # --- split flat sentences into padded per-conversation stacks (pad()) ---
    conv_lengths = list(conv_lengths_static)
    n_conv = len(conv_lengths)
    max_len = max(conv_lengths)
    n_conv_pad = _round_up(n_conv, 8)
    starts = np.concatenate([[0], np.cumsum(conv_lengths)[:-1]]).tolist()
    conv_stack = []
    for s, l in zip(starts, conv_lengths):
        chunk = enc_h[s:s + l]                            # [l, H_enc]
        conv_stack.append(jnp.pad(chunk, ((0, max_len - l), (0, 0))))
    conv_hidden = jnp.stack(conv_stack, 0)                # [n_conv, max_len, H_enc]
    conv_hidden = jnp.pad(conv_hidden,
                          ((0, n_conv_pad - n_conv), (0, 0), (0, 0)))

    # --- context encoder over conversation turns ---
    x_ctx = jnp.transpose(conv_hidden, (1, 0, 2))         # [max_len, n_conv_pad, H_enc]
    conv_len_arr = jnp.pad(jnp.asarray(conv_lengths, jnp.int32),
                           (0, n_conv_pad - n_conv))
    ctx_all = gru_all_outputs(
        x_ctx, conv_len_arr[:, None],
        params["ctx_wih"], params["ctx_whh"],
        params["ctx_bih"], params["ctx_bhh"])             # [max_len, n_conv_pad, C]
    ctx_all = jnp.transpose(ctx_all, (1, 0, 2))           # [n_conv_pad, max_len, C]
    context_outputs = jnp.concatenate(
        [ctx_all[i, :l, :] for i, l in enumerate(conv_lengths)], axis=0)  # [N, C]
    context_outputs = jnp.pad(context_outputs, ((0, pad_n), (0, 0)))      # [N_pad, C]

    # --- context2decoder FeedForward ---
    decoder_init = linear_tanh(context_outputs,
                               params["c2d_w"], params["c2d_b"])  # [N_pad, H_dec]

    # --- decoder recurrence (hidden states only) ---
    x_dec = jnp.transpose(emb[tgt], (1, 0, 2))            # [T, N_pad, E]
    dec_hs = decoder_hidden(
        x_dec, decoder_init,
        params["dec_wih"], params["dec_whh"],
        params["dec_bih"], params["dec_bhh"])             # [T, N_pad, H_dec]

    # --- vocab projection: tiled bf16 matmul, logits produced in [N,T,V] order
    #     (transpose the small hidden tensor, never the big logits tensor) ---
    hs_bt = jnp.transpose(dec_hs, (1, 0, 2)).reshape(N_pad * T, H_dec)
    logits = vocab_projection(hs_bt, params["dec_wout"], params["dec_bout"])
    logits = logits.reshape(N_pad, T, V)[:N]
    # NOTE: logits are computed for padded target positions too; the training
    # loss is expected to mask padding downstream (matches PyTorch path).
    return logits


# ----------------------------------------------------------------------------
# Pure-JAX reference (same math, f32 everywhere, lax.scan) for correctness
# ----------------------------------------------------------------------------
def _gru_step_ref(x, h, wih, whh, bih, bhh):
    H = h.shape[-1]
    gi = x @ wih + bih
    gh = h @ whh + bhh
    r = jax.nn.sigmoid(gi[:, :H] + gh[:, :H])
    z = jax.nn.sigmoid(gi[:, H:2 * H] + gh[:, H:2 * H])
    n = jnp.tanh(gi[:, 2 * H:] + r * gh[:, 2 * H:])
    return (1.0 - z) * n + z * h


def _gru_ref(x_tbe, lengths, wih, whh, bih, bhh):
    T, B, _ = x_tbe.shape
    H = whh.shape[0]
    mask = (jnp.arange(T)[:, None] < lengths[None, :])[:, :, None]  # [T,B,1]

    def step(h, inp):
        x, m = inp
        h = jnp.where(m, _gru_step_ref(x, h, wih, whh, bih, bhh), h)
        return h, h

    hT, hs = lax.scan(step, jnp.zeros((B, H), jnp.float32), (x_tbe, mask))
    return hs, hT


def hred_forward_ref(params, input_sentences, input_sentence_length,
                     conv_lengths_static, target_sentences):
    emb = params["embedding"]
    N, T = input_sentences.shape
    H_dec = params["dec_whh"].shape[0]

    x_enc = jnp.transpose(emb[input_sentences], (1, 0, 2))
    _, enc_h = _gru_ref(x_enc, input_sentence_length.astype(jnp.int32),
                        params["enc_wih"], params["enc_whh"],
                        params["enc_bih"], params["enc_bhh"])

    conv_lengths = list(conv_lengths_static)
    max_len = max(conv_lengths)
    starts = np.concatenate([[0], np.cumsum(conv_lengths)[:-1]]).tolist()
    conv_hidden = jnp.stack(
        [jnp.pad(enc_h[s:s + l], ((0, max_len - l), (0, 0)))
         for s, l in zip(starts, conv_lengths)], 0)
    x_ctx = jnp.transpose(conv_hidden, (1, 0, 2))
    ctx_all, _ = _gru_ref(x_ctx, jnp.asarray(conv_lengths, jnp.int32),
                          params["ctx_wih"], params["ctx_whh"],
                          params["ctx_bih"], params["ctx_bhh"])
    ctx_all = jnp.transpose(ctx_all, (1, 0, 2))
    context_outputs = jnp.concatenate(
        [ctx_all[i, :l, :] for i, l in enumerate(conv_lengths)], axis=0)

    dec_init = jnp.tanh(context_outputs @ params["c2d_w"] + params["c2d_b"])
    h = dec_init.reshape(1, N, H_dec)[0]

    x_dec = jnp.transpose(emb[target_sentences], (1, 0, 2))

    def step(h, x):
        h = _gru_step_ref(x, h, params["dec_wih"], params["dec_whh"],
                          params["dec_bih"], params["dec_bhh"])
        return h, h @ params["dec_wout"] + params["dec_bout"]

    _, logits = lax.scan(step, h, x_dec)
    return jnp.transpose(logits, (1, 0, 2))


# ----------------------------------------------------------------------------
# Deterministic parameter construction + demo
# ----------------------------------------------------------------------------
def make_params(key, vocab, emb_dim, h_enc, ctx, h_dec):
    ks = jax.random.split(key, 16)
    u = lambda k, s: jax.random.uniform(k, s, jnp.float32, -0.1, 0.1)
    return {
        "embedding": u(ks[0], (vocab, emb_dim)),
        # fused GRU weights: [in, 3H] with gate order (r, z, n)
        "enc_wih": u(ks[1], (emb_dim, 3 * h_enc)),
        "enc_whh": u(ks[2], (h_enc, 3 * h_enc)),
        "enc_bih": u(ks[3], (1, 3 * h_enc)),
        "enc_bhh": u(ks[4], (1, 3 * h_enc)),
        "ctx_wih": u(ks[5], (h_enc, 3 * ctx)),     # context in = n_layers*h_enc*dirs
        "ctx_whh": u(ks[6], (ctx, 3 * ctx)),
        "ctx_bih": u(ks[7], (1, 3 * ctx)),
        "ctx_bhh": u(ks[8], (1, 3 * ctx)),
        "c2d_w": u(ks[9], (ctx, h_dec)),           # num_layers * decoder_hidden
        "c2d_b": u(ks[10], (1, h_dec)),
        "dec_wih": u(ks[11], (emb_dim, 3 * h_dec)),
        "dec_whh": u(ks[12], (h_dec, 3 * h_dec)),
        "dec_bih": u(ks[13], (1, 3 * h_dec)),
        "dec_bhh": u(ks[14], (1, 3 * h_dec)),
        "dec_wout": u(ks[15], (h_dec, vocab)),
        "dec_bout": jnp.zeros((1, vocab), jnp.float32),
    }


if __name__ == "__main__":
    # small but lane/sublane-friendly sizes (H multiples of 128, V multiple of 128)
    VOCAB, EMB, H_ENC, CTX, H_DEC = 512, 64, 128, 128, 128
    N_SENT, SEQ = 6, 8
    CONV_LENGTHS = [2, 1, 3]                       # 3 conversations, 6 sentences

    key = jax.random.PRNGKey(0)
    kp, k1, k2, k3 = jax.random.split(key, 4)
    params = make_params(kp, VOCAB, EMB, H_ENC, CTX, H_DEC)

    input_sentences = jax.random.randint(k1, (N_SENT, SEQ), 0, VOCAB, jnp.int32)
    input_sentence_length = jax.random.randint(k2, (N_SENT,), 1, SEQ + 1, jnp.int32)
    target_sentences = jax.random.randint(k3, (N_SENT, SEQ), 0, VOCAB, jnp.int32)

    out = hred_forward(params, input_sentences, input_sentence_length,
                       CONV_LENGTHS, target_sentences)
    out = jax.block_until_ready(out)
    assert out.shape == (N_SENT, SEQ, VOCAB), out.shape

    ref = jax.block_until_ready(
        hred_forward_ref(params, input_sentences, input_sentence_length,
                         CONV_LENGTHS, target_sentences))
    # recurrences are f32 (tight); vocab projection is bf16 on the MXU, hence 2e-2
    np.testing.assert_allclose(np.asarray(out), np.asarray(ref),
                               rtol=2e-2, atol=2e-2)
    print("KERNEL_OK")
</pallas_src>

<mosaic_0001>
module attributes {stable_mosaic.version = 11 : i64} {
  func.func @gru_last_hidden_kernel(%arg0: i32, %arg1: memref<1x8x64xf32, #tpu.memory_space<vmem>>, %arg2: memref<8x1xi32, #tpu.memory_space<vmem>>, %arg3: memref<64x384xf32, #tpu.memory_space<vmem>>, %arg4: memref<128x384xf32, #tpu.memory_space<vmem>>, %arg5: memref<1x384xf32, #tpu.memory_space<vmem>>, %arg6: memref<1x384xf32, #tpu.memory_space<vmem>>, %arg7: memref<8x128xf32, #tpu.memory_space<vmem>>) attributes {dimension_semantics = [#tpu.dimension_semantics<arbitrary>], iteration_bounds = array<i64: 8>, scalar_prefetch = 0 : i64, scratch_operands = 0 : i64, tpu.core_type = #tpu.core_type<tc>, window_params = [{transform_indices = @transform_0, window_bounds = array<i64: 1, 8, 64>}, {pipeline_mode = #tpu.pipeline_mode<synchronous>, transform_indices = @transform_1, window_bounds = array<i64: 8, 1>}, {pipeline_mode = #tpu.pipeline_mode<synchronous>, transform_indices = @transform_2, window_bounds = array<i64: 64, 384>}, {pipeline_mode = #tpu.pipeline_mode<synchronous>, transform_indices = @transform_3, window_bounds = array<i64: 128, 384>}, {pipeline_mode = #tpu.pipeline_mode<synchronous>, transform_indices = @transform_4, window_bounds = array<i64: 1, 384>}, {pipeline_mode = #tpu.pipeline_mode<synchronous>, transform_indices = @transform_5, window_bounds = array<i64: 1, 384>}, {pipeline_mode = #tpu.pipeline_mode<synchronous>, transform_indices = @transform_6, window_bounds = array<i64: 8, 128>}]} {
    %c0_i32 = arith.constant 0 : i32
    %0 = arith.cmpi eq, %arg0, %c0_i32 : i32
    %1 = arith.extui %0 : i1 to i32
    %c0_i32_0 = arith.constant 0 : i32
    %2 = arith.cmpi ne, %1, %c0_i32_0 : i32
    scf.if %2 {
      %cst_20 = arith.constant 0.000000e+00 : f32
      %50 = vector.broadcast %cst_20 : f32 to vector<8x128xf32>
      %c0_21 = arith.constant 0 : index
      %c0_22 = arith.constant 0 : index
      %51 = vector.load %arg7[%c0_21, %c0_22] : memref<8x128xf32, #tpu.memory_space<vmem>>, vector<8x128xf32>
      tpu.vector_store %arg7[%c0_21, %c0_22], %50 {strides = array<i32>} : memref<8x128xf32, #tpu.memory_space<vmem>>, vector<8x128xf32>,
    } else {
    }
    %c0 = arith.constant 0 : index
    %c0_1 = arith.constant 0 : index
    %3 = vector.load %arg7[%c0, %c0_1] : memref<8x128xf32, #tpu.memory_space<vmem>>, vector<8x128xf32>
    %c0_2 = arith.constant 0 : index
    %c0_3 = arith.constant 0 : index
    %c0_4 = arith.constant 0 : index
    %4 = vector.load %arg1[%c0_2, %c0_3, %c0_4] : memref<1x8x64xf32, #tpu.memory_space<vmem>>, vector<1x8x64xf32>
    %5 = vector.shape_cast %4 : vector<1x8x64xf32> to vector<8x64xf32>
    %c0_5 = arith.constant 0 : index
    %c0_6 = arith.constant 0 : index
    %6 = vector.load %arg3[%c0_5, %c0_6] : memref<64x384xf32, #tpu.memory_space<vmem>>, vector<64x384xf32>
    %cst = arith.constant dense<0.000000e+00> : vector<8x384xf32>
    %7 = tpu.matmul %5, %6, %cst {dimension_numbers = #tpu.dot_dimension_numbers<[1], [0], [0], [1], [0, 0, 1, 1], [], []>} : vector<8x64xf32>, vector<64x384xf32>, vector<8x384xf32> -> vector<8x384xf32>
    %c0_7 = arith.constant 0 : index
    %c0_8 = arith.constant 0 : index
    %8 = vector.load %arg5[%c0_7, %c0_8] : memref<1x384xf32, #tpu.memory_space<vmem>>, vector<1x384xf32>
    %9 = vector.broadcast %8 : vector<1x384xf32> to vector<8x384xf32>
    %10 = arith.addf %7, %9 : vector<8x384xf32>
    %c0_9 = arith.constant 0 : index
    %c0_10 = arith.constant 0 : index
    %11 = vector.load %arg4[%c0_9, %c0_10] : memref<128x384xf32, #tpu.memory_space<vmem>>, vector<128x384xf32>
    %cst_11 = arith.constant dense<0.000000e+00> : vector<8x384xf32>
    %12 = tpu.matmul %3, %11, %cst_11 {dimension_numbers = #tpu.dot_dimension_numbers<[1], [0], [0], [1], [0, 0, 1, 1], [], []>} : vector<8x128xf32>, vector<128x384xf32>, vector<8x384xf32> -> vector<8x384xf32>
    %c0_12 = arith.constant 0 : index
    %c0_13 = arith.constant 0 : index
    %13 = vector.load %arg6[%c0_12, %c0_13] : memref<1x384xf32, #tpu.memory_space<vmem>>, vector<1x384xf32>
    %14 = vector.broadcast %13 : vector<1x384xf32> to vector<8x384xf32>
    %15 = arith.addf %12, %14 : vector<8x384xf32>
    %16 = vector.extract_strided_slice %10 {offsets = [0, 0], sizes = [8, 128], strides = [1, 1]} : vector<8x384xf32> to vector<8x128xf32>
    %17 = vector.extract_strided_slice %15 {offsets = [0, 0], sizes = [8, 128], strides = [1, 1]} : vector<8x384xf32> to vector<8x128xf32>
    %18 = arith.addf %16, %17 : vector<8x128xf32>
    %19 = arith.negf %18 : vector<8x128xf32>
    %20 = math.exp %19 : vector<8x128xf32>
    %cst_14 = arith.constant 1.000000e+00 : f32
    %21 = vector.broadcast %cst_14 : f32 to vector<8x128xf32>
    %22 = arith.addf %21, %20 : vector<8x128xf32>
    %23 = arith.divf %21, %22 : vector<8x128xf32>
    %24 = vector.extract_strided_slice %10 {offsets = [0, 128], sizes = [8, 128], strides = [1, 1]} : vector<8x384xf32> to vector<8x128xf32>
    %25 = vector.extract_strided_slice %15 {offsets = [0, 128], sizes = [8, 128], strides = [1, 1]} : vector<8x384xf32> to vector<8x128xf32>
    %26 = arith.addf %24, %25 : vector<8x128xf32>
    %27 = arith.negf %26 : vector<8x128xf32>
    %28 = math.exp %27 : vector<8x128xf32>
    %cst_15 = arith.constant 1.000000e+00 : f32
    %29 = vector.broadcast %cst_15 : f32 to vector<8x128xf32>
    %30 = arith.addf %29, %28 : vector<8x128xf32>
    %31 = arith.divf %29, %30 : vector<8x128xf32>
    %32 = vector.extract_strided_slice %10 {offsets = [0, 256], sizes = [8, 128], strides = [1, 1]} : vector<8x384xf32> to vector<8x128xf32>
    %33 = vector.extract_strided_slice %15 {offsets = [0, 256], sizes = [8, 128], strides = [1, 1]} : vector<8x384xf32> to vector<8x128xf32>
    %34 = arith.mulf %23, %33 : vector<8x128xf32>
    %35 = arith.addf %32, %34 : vector<8x128xf32>
    %36 = math.tanh %35 : vector<8x128xf32>
    %37 = arith.subf %3, %36 : vector<8x128xf32>
    %38 = arith.mulf %31, %37 : vector<8x128xf32>
    %39 = arith.addf %36, %38 : vector<8x128xf32>
    %c0_16 = arith.constant 0 : index
    %c0_17 = arith.constant 0 : index
    %40 = vector.load %arg2[%c0_16, %c0_17] : memref<8x1xi32, #tpu.memory_space<vmem>>, vector<8x1xi32>
    %41 = vector.broadcast %arg0 : i32 to vector<8x1xi32>
    %42 = arith.cmpi slt, %41, %40 : vector<8x1xi32>
    %43 = arith.extui %42 : vector<8x1xi1> to vector<8x1xi32>
    %44 = arith.sitofp %43 : vector<8x1xi32> to vector<8x1xf32>
    %45 = arith.subf %39, %3 : vector<8x128xf32>
    %46 = vector.broadcast %44 : vector<8x1xf32> to vector<8x128xf32>
    %47 = arith.mulf %46, %45 : vector<8x128xf32>
    %48 = arith.addf %3, %47 : vector<8x128xf32>
    %c0_18 = arith.constant 0 : index
    %c0_19 = arith.constant 0 : index
    %49 = vector.load %arg7[%c0_18, %c0_19] : memref<8x128xf32, #tpu.memory_space<vmem>>, vector<8x128xf32>
    tpu.vector_store %arg7[%c0_18, %c0_19], %48 {strides = array<i32>} : memref<8x128xf32, #tpu.memory_space<vmem>>, vector<8x128xf32>,
    return
  }
  func.func @transform_0(%arg0: i32) -> (i32, i32, i32) {
    %c0_i32 = arith.constant 0 : i32
    %c0_i32_0 = arith.constant 0 : i32
    %c0_i32_1 = arith.constant 0 : i32
    return %arg0, %c0_i32, %c0_i32_0 : i32, i32, i32
  }
  func.func @transform_1(%arg0: i32) -> (i32, i32) {
    %c0_i32 = arith.constant 0 : i32
    %c0_i32_0 = arith.constant 0 : i32
    %c0_i32_1 = arith.constant 0 : i32
    return %c0_i32, %c0_i32_0 : i32, i32
  }
  func.func @transform_2(%arg0: i32) -> (i32, i32) {
    %c0_i32 = arith.constant 0 : i32
    %c0_i32_0 = arith.constant 0 : i32
    %c0_i32_1 = arith.constant 0 : i32
    return %c0_i32, %c0_i32_0 : i32, i32
  }
  func.func @transform_3(%arg0: i32) -> (i32, i32) {
    %c0_i32 = arith.constant 0 : i32
    %c0_i32_0 = arith.constant 0 : i32
    %c0_i32_1 = arith.constant 0 : i32
    return %c0_i32, %c0_i32_0 : i32, i32
  }
  func.func @transform_4(%arg0: i32) -> (i32, i32) {
    %c0_i32 = arith.constant 0 : i32
    %c0_i32_0 = arith.constant 0 : i32
    %c0_i32_1 = arith.constant 0 : i32
    return %c0_i32, %c0_i32_0 : i32, i32
  }
  func.func @transform_5(%arg0: i32) -> (i32, i32) {
    %c0_i32 = arith.constant 0 : i32
    %c0_i32_0 = arith.constant 0 : i32
    %c0_i32_1 = arith.constant 0 : i32
    return %c0_i32, %c0_i32_0 : i32, i32
  }
  func.func @transform_6(%arg0: i32) -> (i32, i32) {
    %c0_i32 = arith.constant 0 : i32
    %c0_i32_0 = arith.constant 0 : i32
    %c0_i32_1 = arith.constant 0 : i32
    return %c0_i32, %c0_i32_0 : i32, i32
  }
}

</mosaic_0001>

<llo_original>
// kernel: tpu_custom_call.1
$region0: #{tpu_custom_call.1}
  #allocation0 [shape = 'u32[]', space=smem, size = 0x4, offset = 0x4, fixed_abs, tag = 'smem constant byte address 0x4 - core index']
  #allocation1 [shape = 'u32[144,128]{1,0:T(1,128)}', space=vmem, size = 0x12000, scoped, tag = 'internal scratch']
  %s0 = inlined_call_operand.hbm [shape: f32[8,8,64], index: 0, kind: input, shape index: {}]
  %s1 = inlined_call_operand.vmem [shape: s32[8,1], index: 1, kind: input, shape index: {}]
  %s2 = inlined_call_operand.hbm [shape: f32[64,384], index: 2, kind: input, shape index: {}]
  %s3 = inlined_call_operand.hbm [shape: f32[128,384], index: 3, kind: input, shape index: {}]
  %s4 = inlined_call_operand.vmem [shape: f32[1,384], index: 4, kind: input, shape index: {}]
  %s5 = inlined_call_operand.vmem [shape: f32[1,384], index: 5, kind: input, shape index: {}]
  %s6 = inlined_call_operand.hbm [shape: f32[8,128], index: 6, kind: output, shape index: {}]
  %s7 = sld [smem:[#allocation0]]
  $region73: #{tpu_custom_call.1} parent=0
    _
  %s9 = ssub.s32 1, %s7
  %s10 = scalar_select 0, %s9, %s7
  $region1: #{tpu_custom_call.1} parent=0
    #allocation2 [shape = 'u8[8192]{0}', space=vmem, size = 0x2000, scoped, tag = 'input window, operand 0']
    #allocation3 [shape = 's32[2]{0}', space=sflag, size = 0x8, scoped, tag = 'scoped memory for tpu_custom_call.1']
    #allocation4 [shape = 's32[2]{0}', space=sflag, size = 0x8, scoped, tag = 'scoped memory for tpu_custom_call.1']
    #allocation5 [shape = 'u8[98304]{0}', space=vmem, size = 0x18000, scoped, tag = 'input window, operand 2, single buffered']
    #allocation6 [shape = 's32[1]{0}', space=sflag, size = 0x4, scoped, tag = 'scoped memory for tpu_custom_call.1']
    #allocation7 [shape = 'u8[196608]{0}', space=vmem, size = 0x30000, scoped, tag = 'input window, operand 3, single buffered']
    #allocation8 [shape = 'u8[4096]{0}', space=vmem, size = 0x1000, scoped, tag = 'output window, operand 0, single buffered']
    %11 = vsyncpa [#allocation3], 0
    %s12 = scalar_lea.sflag [#allocation3], 1
    %13 = vsyncpa %s12, 0
    %14 = vsyncpa [#allocation6], 0
    %15 = vsyncpa [#allocation4], 0
    loop: start=0, step=1, limit=10
    $region2: #{tpu_custom_call.1} parent=1 // loop_pre_header
      _
    $region3: #{tpu_custom_call.1} parent=1 // loop_header
      %s17 = sphi 0, %s21
      %p18 = scmp.ge.s32.totalorder %s17, 10
      %s27 = sphi 0, %s29
      %s30 = sphi 0, %s27
      %s31 = sphi 0, %s30
      %s47 = sphi 0, %s31
      %s51 = sphi 0, %s51
      %s53 = sphi 0, %s51
      %s54 = sphi 0, %s53
      %s68 = sphi 0, %s54
      %s72 = sphi 0, %s72
      %s74 = sphi 0, %s72
      %s75 = sphi 0, %s74
      %s89 = sphi 0, %s75
      %s93 = sphi 0, %s93
      %s95 = sphi 0, %s93
      %s96 = sphi 0, %s95
      %s110 = sphi 0, %s96
      %s114 = sphi 0, %s114
      %s116 = sphi 0, %s114
      %s117 = sphi 0, %s116
      %s131 = sphi 0, %s117
      %s135 = sphi 0, %s135
      %s137 = sphi 0, %s135
      %s138 = sphi 0, %s137
      %s152 = sphi 0, %s138
      %s156 = sphi 0, %s156
      %s158 = sphi 0, %s156
      %s159 = sphi 0, %s158
      %s173 = sphi 0, %s159
    $region4: #{tpu_custom_call.1} parent=1 // loop_header_branch
      %20 = sbr.rel (%p18) target = $region8
    $region5: #{tpu_custom_call.1} parent=1 // loop_body
      %s22 = ssub.s32 %s17, 1
      %s23 = ssub.s32 %s17, 2
      %s24 = sadd.s32 %s17, 1
      %s25 = ssub.s32 %s17, %s24
      %p26 = scmp.eq.s32.totalorder %s25, 0
      %s28 = sadd.s32 %s27, 1
      %s29 = scalar_select %p26, %s27, %s28
      %p32 = pneg %p26
      %p33 = scmp.eq.s32.totalorder %s17, 7
      %p34 = por %p32, %p33
      %p35 = scmp.ne.s32.totalorder %s27, %s30
      %p36 = scmp.eq.s32.totalorder %s17, 0
      %p37 = por %p35, %p36
      %p38 = scmp.ne.s32.totalorder %s27, %s30
      %p39 = scmp.eq.s32.totalorder %s22, 7
      %p40 = por %p38, %p39
      %p41 = scmp.ne.s32.totalorder %s30, %s31
      %p42 = scmp.eq.s32.totalorder %s22, 0
      %p43 = por %p41, %p42
      %p44 = scmp.ne.s32.totalorder %s30, %s31
      %p45 = scmp.eq.s32.totalorder %s23, 7
      %p46 = por %p44, %p45
      %p48 = scmp.ne.s32.totalorder %s31, %s47
      %p49 = scmp.eq.s32.totalorder %s23, 0
      %p50 = por %p48, %p49
      %s52 = sadd.s32 %s51, 1
      %p55 = scmp.eq.s32.totalorder %s17, 7
      %p56 = scmp.ne.s32.totalorder %s51, %s53
      %p57 = scmp.eq.s32.totalorder %s17, 0
      %p58 = por %p56, %p57
      %p59 = scmp.ne.s32.totalorder %s51, %s53
      %p60 = scmp.eq.s32.totalorder %s22, 7
      %p61 = por %p59, %p60
      %p62 = scmp.ne.s32.totalorder %s53, %s54
      %p63 = scmp.eq.s32.totalorder %s22, 0
      %p64 = por %p62, %p63
      %p65 = scmp.ne.s32.totalorder %s53, %s54
      %p66 = scmp.eq.s32.totalorder %s23, 7
      %p67 = por %p65, %p66
      %p69 = scmp.ne.s32.totalorder %s54, %s68
      %p70 = scmp.eq.s32.totalorder %s23, 0
      %p71 = por %p69, %p70
      %s73 = sadd.s32 %s72, 1
      %p76 = scmp.eq.s32.totalorder %s17, 7
      %p77 = scmp.ne.s32.totalorder %s72, %s74
      %p78 = scmp.eq.s32.totalorder %s17, 0
      %p79 = por %p77, %p78
      %p80 = scmp.ne.s32.totalorder %s72, %s74
      %p81 = scmp.eq.s32.totalorder %s22, 7
      %p82 = por %p80, %p81
      %p83 = scmp.ne.s32.totalorder %s74, %s75
      %p84 = scmp.eq.s32.totalorder %s22, 0
      %p85 = por %p83, %p84
      %p86 = scmp.ne.s32.totalorder %s74, %s75
      %p87 = scmp.eq.s32.totalorder %s23, 7
      %p88 = por %p86, %p87
      %p90 = scmp.ne.s32.totalorder %s75, %s89
      %p91 = scmp.eq.s32.totalorder %s23, 0
      %p92 = por %p90, %p91
      %s94 = sadd.s32 %s93, 1
      %p97 = scmp.eq.s32.totalorder %s17, 7
      %p98 = scmp.ne.s32.totalorder %s93, %s95
      %p99 = scmp.eq.s32.totalorder %s17, 0
      %p100 = por %p98, %p99
      %p101 = scmp.ne.s32.totalorder %s93, %s95
      %p102 = scmp.eq.s32.totalorder %s22, 7
      %p103 = por %p101, %p102
      %p104 = scmp.ne.s32.totalorder %s95, %s96
      %p105 = scmp.eq.s32.totalorder %s22, 0
      %p106 = por %p104, %p105
      %p107 = scmp.ne.s32.totalorder %s95, %s96
      %p108 = scmp.eq.s32.totalorder %s23, 7
      %p109 = por %p107, %p108
      %p111 = scmp.ne.s32.totalorder %s96, %s110
      %p112 = scmp.eq.s32.totalorder %s23, 0
      %p113 = por %p111, %p112
      %s115 = sadd.s32 %s114, 1
      %p118 = scmp.eq.s32.totalorder %s17, 7
      %p119 = scmp.ne.s32.totalorder %s114, %s116
      %p120 = scmp.eq.s32.totalorder %s17, 0
      %p121 = por %p119, %p120
      %p122 = scmp.ne.s32.totalorder %s114, %s116
      %p123 = scmp.eq.s32.totalorder %s22, 7
      %p124 = por %p122, %p123
      %p125 = scmp.ne.s32.totalorder %s116, %s117
      %p126 = scmp.eq.s32.totalorder %s22, 0
      %p127 = por %p125, %p126
      %p128 = scmp.ne.s32.totalorder %s116, %s117
      %p129 = scmp.eq.s32.totalorder %s23, 7
      %p130 = por %p128, %p129
      %p132 = scmp.ne.s32.totalorder %s117, %s131
      %p133 = scmp.eq.s32.totalorder %s23, 0
      %p134 = por %p132, %p133
      %s136 = sadd.s32 %s135, 1
      %p139 = scmp.eq.s32.totalorder %s17, 7
      %p140 = scmp.ne.s32.totalorder %s135, %s137
      %p141 = scmp.eq.s32.totalorder %s17, 0
      %p142 = por %p140, %p141
      %p143 = scmp.ne.s32.totalorder %s135, %s137
      %p144 = scmp.eq.s32.totalorder %s22, 7
      %p145 = por %p143, %p144
      %p146 = scmp.ne.s32.totalorder %s137, %s138
      %p147 = scmp.eq.s32.totalorder %s22, 0
      %p148 = por %p146, %p147
      %p149 = scmp.ne.s32.totalorder %s137, %s138
      %p150 = scmp.eq.s32.totalorder %s23, 7
      %p151 = por %p149, %p150
      %p153 = scmp.ne.s32.totalorder %s138, %s152
      %p154 = scmp.eq.s32.totalorder %s23, 0
      %p155 = por %p153, %p154
      %s157 = sadd.s32 %s156, 1
      %p160 = scmp.eq.s32.totalorder %s17, 7
      %p161 = scmp.ne.s32.totalorder %s156, %s158
      %p162 = scmp.eq.s32.totalorder %s17, 0
      %p163 = por %p161, %p162
      %p164 = scmp.ne.s32.totalorder %s156, %s158
      %p165 = scmp.eq.s32.totalorder %s22, 7
      %p166 = por %p164, %p165
      %p167 = scmp.ne.s32.totalorder %s158, %s159
      %p168 = scmp.eq.s32.totalorder %s22, 0
      %p169 = por %p167, %p168
      %p170 = scmp.ne.s32.totalorder %s158, %s159
      %p171 = scmp.eq.s32.totalorder %s23, 7
      %p172 = por %p170, %p171
      %p174 = scmp.ne.s32.totalorder %s159, %s173
      %p175 = scmp.eq.s32.totalorder %s23, 0
      %p176 = por %p174, %p175
      %p177 = scmp.le.s32.totalorder 1, %s17
      %p178 = scmp.lt.s32.totalorder %s17, 9
      %p179 = pnand %p177, %p178
      %p180 = pneg %p179
      // Predicated region
      $region9: #{tpu_custom_call.1} parent=5 // pred_check
        _
      $region10: #{tpu_custom_call.1} parent=5 // pred_check_branch
        %182 = sbr.rel (%p179) target = $region12
      $region11: #{tpu_custom_call.1} parent=5 // pred_region
        %s183 = ssub.s32 %s17, 1
        // Predicated region
        $region13: #{tpu_custom_call.1} parent=11 // pred_check
          %p184 = pneg %p64
        $region14: #{tpu_custom_call.1} parent=11 // pred_check_branch
          %186 = sbr.rel (%p184) target = $region16
        $region15: #{tpu_custom_call.1} parent=11 // pred_region
          _
        $region16: #{tpu_custom_call.1} parent=11 // pred_fallthru
          _
        // Predicated region
        $region17: #{tpu_custom_call.1} parent=11 // pred_check
          %p187 = pneg %p85
        $region18: #{tpu_custom_call.1} parent=11 // pred_check_branch
          %189 = sbr.rel (%p187) target = $region20
        $region19: #{tpu_custom_call.1} parent=11 // pred_region
          %s191 = ssub.s32 3072, 3072
          %192 = vsyncadd [#allocation6], %s191
          %s193 = sshll.u32 [#allocation5], 4
          %s194 = int_to_ptr.vmem [resolvable:$true] %s193
          %199 = dma.hbm_to_vmem [thread:$0]  %s2, 3072, %s194, [#allocation6], 384, 384, 24
        $region20: #{tpu_custom_call.1} parent=11 // pred_fallthru
          _
        // Predicated region
        $region21: #{tpu_custom_call.1} parent=11 // pred_check
          %p200 = pneg %p106
        $region22: #{tpu_custom_call.1} parent=11 // pred_check_branch
          %202 = sbr.rel (%p200) target = $region24
        $region23: #{tpu_custom_call.1} parent=11 // pred_region
          %s204 = ssub.s32 6144, 6144
          %205 = vsyncadd [#allocation6], %s204
          %s206 = sshll.u32 [#allocation7], 4
          %s207 = int_to_ptr.vmem [resolvable:$true] %s206
          %212 = dma.hbm_to_vmem [thread:$0]  %s3, 6144, %s207, [#allocation6], 384, 384, 24
        $region24: #{tpu_custom_call.1} parent=11 // pred_fallthru
          _
        // Predicated region
        $region25: #{tpu_custom_call.1} parent=11 // pred_check
          %p213 = pneg %p127
        $region26: #{tpu_custom_call.1} parent=11 // pred_check_branch
          %215 = sbr.rel (%p213) target = $region28
        $region27: #{tpu_custom_call.1} parent=11 // pred_region
          _
        $region28: #{tpu_custom_call.1} parent=11 // pred_fallthru
          _
        // Predicated region
        $region29: #{tpu_custom_call.1} parent=11 // pred_check
          %p216 = pneg %p148
        $region30: #{tpu_custom_call.1} parent=11 // pred_check_branch
          %218 = sbr.rel (%p216) target = $region32
        $region31: #{tpu_custom_call.1} parent=11 // pred_region
          _
        $region32: #{tpu_custom_call.1} parent=11 // pred_fallthru
          _
      $region12: #{tpu_custom_call.1} parent=5 // pred_fallthru
        _
      %p219 = scmp.lt.s32.totalorder %s17, 8
      // Predicated region
      $region33: #{tpu_custom_call.1} parent=5 // pred_check
        %p220 = pneg %p219
      $region34: #{tpu_custom_call.1} parent=5 // pred_check_branch
        %222 = sbr.rel (%p220) target = $region36
      $region35: #{tpu_custom_call.1} parent=5 // pred_region
        // Predicated region
        $region37: #{tpu_custom_call.1} parent=35 // pred_check
          %p223 = pneg %p37
        $region38: #{tpu_custom_call.1} parent=35 // pred_check_branch
          %225 = sbr.rel (%p223) target = $region40
        $region39: #{tpu_custom_call.1} parent=35 // pred_region
          %s226 = sand.u32 %s27, 1
          %s227 = scalar_lea.sflag [#allocation3], %s226
          %s228 = sand.u32 %s27, 1
          %s229 = smul.addr %s228, 8
          %s230 = scalar_lea.vmem [#allocation2], %s229
          %s232 = ssub.s32 128, 128
          %233 = vsyncadd %s227, %s232
          %s234 = smul.addr %s17, 128
          %s235 = scalar_lea.hbm %s0, %s234
          %s237 = sshll.u32 %s230, 4
          %s238 = int_to_ptr.vmem [resolvable:$true] %s237
          %240 = dma.hbm_to_vmem [thread:$0]  %s235, 128, %s238, %s227
        $region40: #{tpu_custom_call.1} parent=35 // pred_fallthru
          _
      $region36: #{tpu_custom_call.1} parent=5 // pred_fallthru
        _
      %p241 = scmp.le.s32.totalorder 1, %s17
      %p242 = scmp.lt.s32.totalorder %s17, 9
      %p243 = pnand %p241, %p242
      %p244 = pneg %p243
      // Predicated region
      $region41: #{tpu_custom_call.1} parent=5 // pred_check
        _
      $region42: #{tpu_custom_call.1} parent=5 // pred_check_branch
        %246 = sbr.rel (%p243) target = $region44
      $region43: #{tpu_custom_call.1} parent=5 // pred_region
        %s247 = ssub.s32 %s17, 1
        %s248 = sand.u32 %s30, 1
        %s249 = scalar_lea.sflag [#allocation3], %s248
        %s250 = sand.u32 %s30, 1
        %s251 = smul.addr %s250, 8
        %s252 = scalar_lea.vmem [#allocation2], %s251
        // Predicated region
        $region45: #{tpu_custom_call.1} parent=43 // pred_check
          %p253 = pneg %p43
        $region46: #{tpu_custom_call.1} parent=43 // pred_check_branch
          %255 = sbr.rel (%p253) target = $region48
        $region47: #{tpu_custom_call.1} parent=43 // pred_region
          %256 = dma.done %s249, 128
        $region48: #{tpu_custom_call.1} parent=43 // pred_fallthru
          _
        // Predicated region
        $region49: #{tpu_custom_call.1} parent=43 // pred_check
          %p257 = pneg %p85
        $region50: #{tpu_custom_call.1} parent=43 // pred_check_branch
          %259 = sbr.rel (%p257) target = $region52
        $region51: #{tpu_custom_call.1} parent=43 // pred_region
          %260 = dma.done [#allocation6], 3072
        $region52: #{tpu_custom_call.1} parent=43 // pred_fallthru
          _
        // Predicated region
        $region53: #{tpu_custom_call.1} parent=43 // pred_check
          %p261 = pneg %p106
        $region54: #{tpu_custom_call.1} parent=43 // pred_check_branch
          %263 = sbr.rel (%p261) target = $region56
        $region55: #{tpu_custom_call.1} parent=43 // pred_region
          %264 = dma.done [#allocation6], 6144
        $region56: #{tpu_custom_call.1} parent=43 // pred_fallthru
          _
        %s265 = sand.u32 %s30, 1
        %s266 = scalar_lea.sflag [#allocation3], %s265
        %s267 = sand.u32 %s30, 1
        %s268 = smul.addr %s267, 8
        %s269 = scalar_lea.vmem [#allocation2], %s268
        %p270 = pneg %p43
        %p271 = pneg %p40
        %p272 = pneg %p64
        %p273 = pneg %p61
        %p274 = pneg %p85
        %p275 = pneg %p82
        %p276 = pneg %p106
        %p277 = pneg %p103
        %p278 = pneg %p127
        %p279 = pneg %p124
        %p280 = pneg %p148
        %p281 = pneg %p145
        %p282 = pneg %p169
        %p283 = pneg %p166
        %p284 = scmp.eq.s32.totalorder %s22, 0
        // Predicated region
        $region57: #{tpu_custom_call.1} parent=43 // pred_check
          %p285 = pneg %p284
        $region58: #{tpu_custom_call.1} parent=43 // pred_check_branch
          %287 = sbr.rel (%p285) target = $region60
        $region59: #{tpu_custom_call.1} parent=43 // pred_region
          %288 = vst [vmem:[#allocation8] sm:$0xff] 0.0
        $region60: #{tpu_custom_call.1} parent=43 // pred_fallthru
          _
        %v289 = vld [vmem:[#allocation8] sm:$0xff]
        %v290 = vld [vmem:[%s252] sm:$0xff]
        %v291 = vld [vmem:[#allocation5] sm:$0xff]
        %v292 = vld [vmem:[#allocation5 + $0x8] sm:$0xff]
        %v293 = vld [vmem:[#allocation5 + $0x10] sm:$0xff]
        %v294 = vld [vmem:[#allocation5 + $0x18] sm:$0xff]
        %v295 = vld [vmem:[#allocation5 + $0x20] sm:$0xff]
        %v296 = vld [vmem:[#allocation5 + $0x28] sm:$0xff]
        %v297 = vld [vmem:[#allocation5 + $0x30] sm:$0xff]
        %v298 = vld [vmem:[#allocation5 + $0x38] sm:$0xff]
        %v299 = vld [vmem:[#allocation5 + $0x40] sm:$0xff]
        %v300 = vld [vmem:[#allocation5 + $0x48] sm:$0xff]
        %v301 = vld [vmem:[#allocation5 + $0x50] sm:$0xff]
        %v302 = vld [vmem:[#allocation5 + $0x58] sm:$0xff]
        %v303 = vld [vmem:[#allocation5 + $0x60] sm:$0xff]
        %v304 = vld [vmem:[#allocation5 + $0x68] sm:$0xff]
        %v305 = vld [vmem:[#allocation5 + $0x70] sm:$0xff]
        %v306 = vld [vmem:[#allocation5 + $0x78] sm:$0xff]
        %v307 = vld [vmem:[#allocation5 + $0x80] sm:$0xff]
        %v308 = vld [vmem:[#allocation5 + $0x88] sm:$0xff]
        %v309 = vld [vmem:[#allocation5 + $0x90] sm:$0xff]
        %v310 = vld [vmem:[#allocation5 + $0x98] sm:$0xff]
        %v311 = vld [vmem:[#allocation5 + $0xa0] sm:$0xff]
        %v312 = vld [vmem:[#allocation5 + $0xa8] sm:$0xff]
        %v313 = vld [vmem:[#allocation5 + $0xb0] sm:$0xff]
        %v314 = vld [vmem:[#allocation5 + $0xb8] sm:$0xff]
        %v315 = vld [vmem:[%s4] sm:$0x7]
        %v317 = vlaneseq
        %v318 = vshrl.u32 %v317, 7
        %v319 = vsub.s32 0, %v318
        %v320 = vrot.slane %v315, %v319
        %v321 = vlaneseq
        %v322 = vshrl.u32 %v321, 7
        %v323 = vsub.s32 1, %v322
        %v324 = vrot.slane %v315, %v323
        %v325 = vlaneseq
        %v326 = vshrl.u32 %v325, 7
        %v327 = vsub.s32 2, %v326
        %v328 = vrot.slane %v315, %v327
        %vm332 = vcmask 523264
        %v334 = vsel %vm332, %v290, 0
        %336 = vmatprep.subr.mxu0 %v292
        %337 = vmatpush1.msra.mxu0 %v291
        %338 = vmatprep.subr.mxu0 %v295
        %339 = vmatpush1.msra.mxu0 %v294
        %340 = vmatprep.subr.mxu0 %v298
        %341 = vmatpush1.msra.mxu0 %v297
        %342 = vmatprep.subr.mxu0 %v301
        %343 = vmatpush1.msra.mxu0 %v300
        %344 = vmatprep.subr.mxu0 %v304
        %345 = vmatpush1.msra.mxu0 %v303
        %346 = vmatprep.subr.mxu0 %v307
        %347 = vmatpush1.msra.mxu0 %v306
        %348 = vmatprep.subr.mxu0 %v310
        %349 = vmatpush1.msra.mxu0 %v309
        %350 = vmatprep.subr.mxu0 %v313
        %351 = vmatpush1.msra.mxu0 %v312
        %352 = vmatprep.subr.mxu0 0.0
        %353 = vmatpush1.msra.mxu0 0.0
        %354 = vmatprep.subr.mxu0 0.0
        %355 = vmatpush1.msra.mxu0 0.0
        %356 = vmatprep.subr.mxu0 0.0
        %357 = vmatpush1.msra.mxu0 0.0
        %358 = vmatprep.subr.mxu0 0.0
        %359 = vmatpush1.msra.mxu0 0.0
        %360 = vmatprep.subr.mxu0 0.0
        %361 = vmatpush1.msra.mxu0 0.0
        %362 = vmatprep.subr.mxu0 0.0
        %363 = vmatpush1.msra.mxu0 0.0
        %364 = vmatprep.subr.mxu0 0.0
        %365 = vmatpush1.msra.mxu0 0.0
        %366 = vmatprep.subr.mxu0 0.0
        %367 = vmatpush1.msra.mxu0 0.0
        %368 = vmatprep.subr.mxu0 0.0
        %369 = vmatpush1.msra.mxu0 0.0
        %370 = vmatprep.subr.mxu0 0.0
        %371 = vmatpush1.msra.mxu0 0.0
        %372 = vmatprep.subr.mxu0 0.0
        %373 = vmatpush1.msra.mxu0 0.0
        %374 = vmatprep.subr.mxu0 0.0
        %375 = vmatpush1.msra.mxu0 0.0
        %376 = vmatprep.subr.mxu0 0.0
        %377 = vmatpush1.msra.mxu0 0.0
        %378 = vmatprep.subr.mxu0 0.0
        %379 = vmatpush1.msra.mxu0 0.0
        %380 = vmatprep.subr.mxu0 0.0
        %381 = vmatpush1.msra.mxu0 0.0
        %382 = vmatprep.subr.mxu0 0.0
        %383 = vmatpush1.msra.mxu0 0.0
        %384 = vmatprep.subr.mxu0 0.0
        %385 = vmatpush1.msra.mxu0 0.0
        %386 = vmatprep.subr.mxu0 0.0
        %387 = vmatpush1.msra.mxu0 0.0
        %388 = vmatprep.subr.mxu0 0.0
        %389 = vmatpush1.msra.mxu0 0.0
        %390 = vmatprep.subr.mxu0 0.0
        %391 = vmatpush1.msra.mxu0 0.0
        %392 = vmatprep.subr.mxu0 0.0
        %393 = vmatpush1.msra.mxu0 0.0
        %394 = vmatprep.subr.mxu0 0.0
        %395 = vmatpush1.msra.mxu0 0.0
        %396 = vmatprep.subr.mxu0 0.0
        %397 = vmatpush1.msra.mxu0 0.0
        %398 = vmatprep.subr.mxu0 0.0
        %399 = vmatpush1.msra.mxu0 0.0
        %400 = vmatprep.mubr.f32.mxu0 0.0
        %401 = vmatmul.mubr.f32.gmra.mrb[0].mxu0 %v334
        %v402 = vpop.f32.mrb[0].mxu0
        %v403 = vadd.f32 %v320, %v402
        %v404 = vpop.f32.mrb[0].mxu0
        %v405 = vadd.f32 %v324, %v404
        %406 = vdwg.mxu0
        %407 = vmatprep.subr.mxu0 0.0
        %408 = vmatpush1.msra.mxu0 %v293
        %409 = vmatprep.subr.mxu0 0.0
        %410 = vmatpush1.msra.mxu0 %v296
        %411 = vmatprep.subr.mxu0 0.0
        %412 = vmatpush1.msra.mxu0 %v299
        %413 = vmatprep.subr.mxu0 0.0
        %414 = vmatpush1.msra.mxu0 %v302
        %415 = vmatprep.subr.mxu0 0.0
        %416 = vmatpush1.msra.mxu0 %v305
        %417 = vmatprep.subr.mxu0 0.0
        %418 = vmatpush1.msra.mxu0 %v308
        %419 = vmatprep.subr.mxu0 0.0
        %420 = vmatpush1.msra.mxu0 %v311
        %421 = vmatprep.subr.mxu0 0.0
        %422 = vmatpush1.msra.mxu0 %v314
        %423 = vmatprep.subr.mxu0 0.0
        %424 = vmatpush1.msra.mxu0 0.0
        %425 = vmatprep.subr.mxu0 0.0
        %426 = vmatpush1.msra.mxu0 0.0
        %427 = vmatprep.subr.mxu0 0.0
        %428 = vmatpush1.msra.mxu0 0.0
        %429 = vmatprep.subr.mxu0 0.0
        %430 = vmatpush1.msra.mxu0 0.0
        %431 = vmatprep.subr.mxu0 0.0
        %432 = vmatpush1.msra.mxu0 0.0
        %433 = vmatprep.subr.mxu0 0.0
        %434 = vmatpush1.msra.mxu0 0.0
        %435 = vmatprep.subr.mxu0 0.0
        %436 = vmatpush1.msra.mxu0 0.0
        %437 = vmatprep.subr.mxu0 0.0
        %438 = vmatpush1.msra.mxu0 0.0
        %439 = vmatprep.subr.mxu0 0.0
        %440 = vmatpush1.msra.mxu0 0.0
        %441 = vmatprep.subr.mxu0 0.0
        %442 = vmatpush1.msra.mxu0 0.0
        %443 = vmatprep.subr.mxu0 0.0
        %444 = vmatpush1.msra.mxu0 0.0
        %445 = vmatprep.subr.mxu0 0.0
        %446 = vmatpush1.msra.mxu0 0.0
        %447 = vmatprep.subr.mxu0 0.0
        %448 = vmatpush1.msra.mxu0 0.0
        %449 = vmatprep.subr.mxu0 0.0
        %450 = vmatpush1.msra.mxu0 0.0
        %451 = vmatprep.subr.mxu0 0.0
        %452 = vmatpush1.msra.mxu0 0.0
        %453 = vmatprep.subr.mxu0 0.0
        %454 = vmatpush1.msra.mxu0 0.0
        %455 = vmatprep.subr.mxu0 0.0
        %456 = vmatpush1.msra.mxu0 0.0
        %457 = vmatprep.subr.mxu0 0.0
        %458 = vmatpush1.msra.mxu0 0.0
        %459 = vmatprep.subr.mxu0 0.0
        %460 = vmatpush1.msra.mxu0 0.0
        %461 = vmatprep.subr.mxu0 0.0
        %462 = vmatpush1.msra.mxu0 0.0
        %463 = vmatprep.subr.mxu0 0.0
        %464 = vmatpush1.msra.mxu0 0.0
        %465 = vmatprep.subr.mxu0 0.0
        %466 = vmatpush1.msra.mxu0 0.0
        %467 = vmatprep.subr.mxu0 0.0
        %468 = vmatpush1.msra.mxu0 0.0
        %469 = vmatprep.subr.mxu0 0.0
        %470 = vmatpush1.msra.mxu0 0.0
        %471 = vmatprep.mubr.f32.mxu0 0.0
        %472 = vmatmul.mubr.f32.gmra.mrb[0].mxu0 %v334
        %v473 = vpop.f32.mrb[0].mxu0
        %v474 = vadd.f32 %v328, %v473
        %v475 = vpop.f32.mrb[0].mxu0
        %476 = vdwg.mxu0
        %v477 = vld [vmem:[#allocation7] sm:$0xff]
        %v478 = vld [vmem:[#allocation7 + $0x8] sm:$0xff]
        %v479 = vld [vmem:[#allocation7 + $0x10] sm:$0xff]
        %v480 = vld [vmem:[#allocation7 + $0x18] sm:$0xff]
        %v481 = vld [vmem:[#allocation7 + $0x20] sm:$0xff]
        %v482 = vld [vmem:[#allocation7 + $0x28] sm:$0xff]
        %v483 = vld [vmem:[#allocation7 + $0x30] sm:$0xff]
        %v484 = vld [vmem:[#allocation7 + $0x38] sm:$0xff]
        %v485 = vld [vmem:[#allocation7 + $0x40] sm:$0xff]
        %v486 = vld [vmem:[#allocation7 + $0x48] sm:$0xff]
        %v487 = vld [vmem:[#allocation7 + $0x50] sm:$0xff]
        %v488 = vld [vmem:[#allocation7 + $0x58] sm:$0xff]
        %v489 = vld [vmem:[#allocation7 + $0x60] sm:$0xff]
        %v490 = vld [vmem:[#allocation7 + $0x68] sm:$0xff]
        %v491 = vld [vmem:[#allocation7 + $0x70] sm:$0xff]
        %v492 = vld [vmem:[#allocation7 + $0x78] sm:$0xff]
        %v493 = vld [vmem:[#allocation7 + $0x80] sm:$0xff]
        %v494 = vld [vmem:[#allocation7 + $0x88] sm:$0xff]
        %v495 = vld [vmem:[#allocation7 + $0x90] sm:$0xff]
        %v496 = vld [vmem:[#allocation7 + $0x98] sm:$0xff]
        %v497 = vld [vmem:[#allocation7 + $0xa0] sm:$0xff]
        %v498 = vld [vmem:[#allocation7 + $0xa8] sm:$0xff]
        %v499 = vld [vmem:[#allocation7 + $0xb0] sm:$0xff]
        %v500 = vld [vmem:[#allocation7 + $0xb8] sm:$0xff]
        %v501 = vld [vmem:[#allocation7 + $0xc0] sm:$0xff]
        %v502 = vld [vmem:[#allocation7 + $0xc8] sm:$0xff]
        %v503 = vld [vmem:[#allocation7 + $0xd0] sm:$0xff]
        %v504 = vld [vmem:[#allocation7 + $0xd8] sm:$0xff]
        %v505 = vld [vmem:[#allocation7 + $0xe0] sm:$0xff]
        %v506 = vld [vmem:[#allocation7 + $0xe8] sm:$0xff]
        %v507 = vld [vmem:[#allocation7 + $0xf0] sm:$0xff]
        %v508 = vld [vmem:[#allocation7 + $0xf8] sm:$0xff]
        %v509 = vld [vmem:[#allocation7 + $0x100] sm:$0xff]
        %v510 = vld [vmem:[#allocation7 + $0x108] sm:$0xff]
        %v511 = vld [vmem:[#allocation7 + $0x110] sm:$0xff]
        %v512 = vld [vmem:[#allocation7 + $0x118] sm:$0xff]
        %v513 = vld [vmem:[#allocation7 + $0x120] sm:$0xff]
        %v514 = vld [vmem:[#allocation7 + $0x128] sm:$0xff]
        %v515 = vld [vmem:[#allocation7 + $0x130] sm:$0xff]
        %v516 = vld [vmem:[#allocation7 + $0x138] sm:$0xff]
        %v517 = vld [vmem:[#allocation7 + $0x140] sm:$0xff]
        %v518 = vld [vmem:[#allocation7 + $0x148] sm:$0xff]
        %v519 = vld [vmem:[#allocation7 + $0x150] sm:$0xff]
        %v520 = vld [vmem:[#allocation7 + $0x158] sm:$0xff]
        %v521 = vld [vmem:[#allocation7 + $0x160] sm:$0xff]
        %v522 = vld [vmem:[#allocation7 + $0x168] sm:$0xff]
        %v523 = vld [vmem:[#allocation7 + $0x170] sm:$0xff]
        %v524 = vld [vmem:[#allocation7 + $0x178] sm:$0xff]
        %v525 = vld [vmem:[%s5] sm:$0x7]
        %v527 = vlaneseq
        %v528 = vshrl.u32 %v527, 7
        %v529 = vsub.s32 0, %v528
        %v530 = vrot.slane %v525, %v529
        %v531 = vlaneseq
        %v532 = vshrl.u32 %v531, 7
        %v533 = vsub.s32 1, %v532
        %v534 = vrot.slane %v525, %v533
        %v535 = vlaneseq
        %v536 = vshrl.u32 %v535, 7
        %v537 = vsub.s32 2, %v536
        %v538 = vrot.slane %v525, %v537
        %542 = vmatprep.subr.mxu0 %v478
        %543 = vmatpush1.msra.mxu0 %v477
        %544 = vmatprep.subr.mxu0 %v481
        %545 = vmatpush1.msra.mxu0 %v480
        %546 = vmatprep.subr.mxu0 %v484
        %547 = vmatpush1.msra.mxu0 %v483
        %548 = vmatprep.subr.mxu0 %v487
        %549 = vmatpush1.msra.mxu0 %v486
        %550 = vmatprep.subr.mxu0 %v490
        %551 = vmatpush1.msra.mxu0 %v489
        %552 = vmatprep.subr.mxu0 %v493
        %553 = vmatpush1.msra.mxu0 %v492
        %554 = vmatprep.subr.mxu0 %v496
        %555 = vmatpush1.msra.mxu0 %v495
        %556 = vmatprep.subr.mxu0 %v499
        %557 = vmatpush1.msra.mxu0 %v498
        %558 = vmatprep.subr.mxu0 %v502
        %559 = vmatpush1.msra.mxu0 %v501
        %560 = vmatprep.subr.mxu0 %v505
        %561 = vmatpush1.msra.mxu0 %v504
        %562 = vmatprep.subr.mxu0 %v508
        %563 = vmatpush1.msra.mxu0 %v507
        %564 = vmatprep.subr.mxu0 %v511
        %565 = vmatpush1.msra.mxu0 %v510
        %566 = vmatprep.subr.mxu0 %v514
        %567 = vmatpush1.msra.mxu0 %v513
        %568 = vmatprep.subr.mxu0 %v517
        %569 = vmatpush1.msra.mxu0 %v516
        %570 = vmatprep.subr.mxu0 %v520
        %571 = vmatpush1.msra.mxu0 %v519
        %572 = vmatprep.subr.mxu0 %v523
        %573 = vmatpush1.msra.mxu0 %v522
        %574 = vmatprep.subr.mxu0 0.0
        %575 = vmatpush1.msra.mxu0 0.0
        %576 = vmatprep.subr.mxu0 0.0
        %577 = vmatpush1.msra.mxu0 0.0
        %578 = vmatprep.subr.mxu0 0.0
        %579 = vmatpush1.msra.mxu0 0.0
        %580 = vmatprep.subr.mxu0 0.0
        %581 = vmatpush1.msra.mxu0 0.0
        %582 = vmatprep.subr.mxu0 0.0
        %583 = vmatpush1.msra.mxu0 0.0
        %584 = vmatprep.subr.mxu0 0.0
        %585 = vmatpush1.msra.mxu0 0.0
        %586 = vmatprep.subr.mxu0 0.0
        %587 = vmatpush1.msra.mxu0 0.0
        %588 = vmatprep.subr.mxu0 0.0
        %589 = vmatpush1.msra.mxu0 0.0
        %590 = vmatprep.subr.mxu0 0.0
        %591 = vmatpush1.msra.mxu0 0.0
        %592 = vmatprep.subr.mxu0 0.0
        %593 = vmatpush1.msra.mxu0 0.0
        %594 = vmatprep.subr.mxu0 0.0
        %595 = vmatpush1.msra.mxu0 0.0
        %596 = vmatprep.subr.mxu0 0.0
        %597 = vmatpush1.msra.mxu0 0.0
        %598 = vmatprep.subr.mxu0 0.0
        %599 = vmatpush1.msra.mxu0 0.0
        %600 = vmatprep.subr.mxu0 0.0
        %601 = vmatpush1.msra.mxu0 0.0
        %602 = vmatprep.subr.mxu0 0.0
        %603 = vmatpush1.msra.mxu0 0.0
        %604 = vmatprep.subr.mxu0 0.0
        %605 = vmatpush1.msra.mxu0 0.0
        %606 = vmatprep.mubr.f32.mxu0 0.0
        %607 = vmatmul.mubr.f32.gmra.mrb[0].mxu0 %v289
        %v608 = vpop.f32.mrb[0].mxu0
        %v609 = vadd.f32 %v530, %v608
        %v610 = vpop.f32.mrb[0].mxu0
        %v611 = vadd.f32 %v534, %v610
        %612 = vdwg.mxu0
        %613 = vmatprep.subr.mxu0 0.0
        %614 = vmatpush1.msra.mxu0 %v479
        %615 = vmatprep.subr.mxu0 0.0
        %616 = vmatpush1.msra.mxu0 %v482
        %617 = vmatprep.subr.mxu0 0.0
        %618 = vmatpush1.msra.mxu0 %v485
        %619 = vmatprep.subr.mxu0 0.0
        %620 = vmatpush1.msra.mxu0 %v488
        %621 = vmatprep.subr.mxu0 0.0
        %622 = vmatpush1.msra.mxu0 %v491
        %623 = vmatprep.subr.mxu0 0.0
        %624 = vmatpush1.msra.mxu0 %v494
        %625 = vmatprep.subr.mxu0 0.0
        %626 = vmatpush1.msra.mxu0 %v497
        %627 = vmatprep.subr.mxu0 0.0
        %628 = vmatpush1.msra.mxu0 %v500
        %629 = vmatprep.subr.mxu0 0.0
        %630 = vmatpush1.msra.mxu0 %v503
        %631 = vmatprep.subr.mxu0 0.0
        %632 = vmatpush1.msra.mxu0 %v506
        %633 = vmatprep.subr.mxu0 0.0
        %634 = vmatpush1.msra.mxu0 %v509
        %635 = vmatprep.subr.mxu0 0.0
        %636 = vmatpush1.msra.mxu0 %v512
        %637 = vmatprep.subr.mxu0 0.0
        %638 = vmatpush1.msra.mxu0 %v515
        %639 = vmatprep.subr.mxu0 0.0
        %640 = vmatpush1.msra.mxu0 %v518
        %641 = vmatprep.subr.mxu0 0.0
        %642 = vmatpush1.msra.mxu0 %v521
        %643 = vmatprep.subr.mxu0 0.0
        %644 = vmatpush1.msra.mxu0 %v524
        %645 = vmatprep.subr.mxu0 0.0
        %646 = vmatpush1.msra.mxu0 0.0
        %647 = vmatprep.subr.mxu0 0.0
        %648 = vmatpush1.msra.mxu0 0.0
        %649 = vmatprep.subr.mxu0 0.0
        %650 = vmatpush1.msra.mxu0 0.0
        %651 = vmatprep.subr.mxu0 0.0
        %652 = vmatpush1.msra.mxu0 0.0
        %653 = vmatprep.subr.mxu0 0.0
        %654 = vmatpush1.msra.mxu0 0.0
        %655 = vmatprep.subr.mxu0 0.0
        %656 = vmatpush1.msra.mxu0 0.0
        %657 = vmatprep.subr.mxu0 0.0
        %658 = vmatpush1.msra.mxu0 0.0
        %659 = vmatprep.subr.mxu0 0.0
        %660 = vmatpush1.msra.mxu0 0.0
        %661 = vmatprep.subr.mxu0 0.0
        %662 = vmatpush1.msra.mxu0 0.0
        %663 = vmatprep.subr.mxu0 0.0
        %664 = vmatpush1.msra.mxu0 0.0
        %665 = vmatprep.subr.mxu0 0.0
        %666 = vmatpush1.msra.mxu0 0.0
        %667 = vmatprep.subr.mxu0 0.0
        %668 = vmatpush1.msra.mxu0 0.0
        %669 = vmatprep.subr.mxu0 0.0
        %670 = vmatpush1.msra.mxu0 0.0
        %671 = vmatprep.subr.mxu0 0.0
        %672 = vmatpush1.msra.mxu0 0.0
        %673 = vmatprep.subr.mxu0 0.0
        %674 = vmatpush1.msra.mxu0 0.0
        %675 = vmatprep.subr.mxu0 0.0
        %676 = vmatpush1.msra.mxu0 0.0
        %677 = vmatprep.mubr.f32.mxu0 0.0
        %678 = vmatmul.mubr.f32.gmra.mrb[0].mxu0 %v289
        %v679 = vpop.f32.mrb[0].mxu0
        %v680 = vadd.f32 %v538, %v679
        %v681 = vpop.f32.mrb[0].mxu0
        %682 = vdwg.mxu0
        %v683 = vadd.f32 %v403, %v609
        %v684 = vxor.u32 %v683, 2147483648
        %v685 = vmul.f32 %v684, 1.442695
        %v686 = vpow.pop %v685
        %v687 = vadd.f32 %v686, 1.0
        %v688 = vrcp.pop %v687
        %v689 = vmul.f32 1.0, %v688
        %v690 = vadd.f32 %v405, %v611
        %v691 = vxor.u32 %v690, 2147483648
        %v692 = vmul.f32 %v691, 1.442695
        %v693 = vpow.pop %v692
        %v694 = vadd.f32 %v693, 1.0
        %v695 = vrcp.pop %v694
        %v696 = vmul.f32 1.0, %v695
        %v697 = vmul.f32 %v689, %v680
        %v698 = vadd.f32 %v474, %v697
        %v699 = vtanh.pop %v698
        %v700 = vsub.f32 %v289, %v699
        %v701 = vmul.f32 %v696, %v700
        %v702 = vadd.f32 %v699, %v701
        %v703 = vld [vmem:[%s1] sm:$0xff]
        %v704 = vstv %s22
        %vm705 = vcmp.lt.s32.totalorder %v704, %v703
        %v706 = vsel %vm705, 1, 0
        %v707 = vcvt.s32.f32 %v706
        %v708 = vsub.f32 %v702, %v289
        %710 = vset.pattern.permute.xlu0 0
        %711 = vperm.xlu0 %710, %v707
        %v712 = vpop.permute.xlu0 %711
        %v714 = vmul.f32 %v712, %v708
        %v715 = vadd.f32 %v289, %v714
        %716 = vst [vmem:[#allocation8] sm:$0xff] %v715
        // Predicated region
        $region61: #{tpu_custom_call.1} parent=43 // pred_check
          %p717 = pneg %p166
        $region62: #{tpu_custom_call.1} parent=43 // pred_check_branch
          %719 = sbr.rel (%p717) target = $region64
        $region63: #{tpu_custom_call.1} parent=43 // pred_region
          %s721 = ssub.s32 128, 128
          %722 = vsyncadd [#allocation4], %s721
          %s724 = sshll.u32 [#allocation8], 4
          %s725 = int_to_ptr.vmem [resolvable:$true] %s724
          %727 = dma.vmem_to_hbm [thread:$0]  %s725, 128, %s6, [#allocation4]
        $region64: #{tpu_custom_call.1} parent=43 // pred_fallthru
          _
        // Predicated region
        $region65: #{tpu_custom_call.1} parent=43 // pred_check
          %p728 = pneg %p166
        $region66: #{tpu_custom_call.1} parent=43 // pred_check_branch
          %730 = sbr.rel (%p728) target = $region68
        $region67: #{tpu_custom_call.1} parent=43 // pred_region
          %731 = dma.done [#allocation4], 128
        $region68: #{tpu_custom_call.1} parent=43 // pred_fallthru
          _
      $region44: #{tpu_custom_call.1} parent=5 // pred_fallthru
        _
      %p732 = scmp.le.s32.totalorder 2, %s17
      // Predicated region
      $region69: #{tpu_custom_call.1} parent=5 // pred_check
        %p733 = pneg %p732
      $region70: #{tpu_custom_call.1} parent=5 // pred_check_branch
        %735 = sbr.rel (%p733) target = $region72
      $region71: #{tpu_custom_call.1} parent=5 // pred_region
        %s736 = ssub.s32 %s17, 2
      $region72: #{tpu_custom_call.1} parent=5 // pred_fallthru
        _
    $region6: #{tpu_custom_call.1} parent=1 // loop_footer
      %s21 = sadd.s32 1, %s17
    $region7: #{tpu_custom_call.1} parent=1 // loop_footer_branch
      %16 = sbr.rel target = $region3
    $region8: #{tpu_custom_call.1} parent=1 // loop_exit
      _
    %737 = vsyncpa [#allocation3], 1
    %s738 = scalar_lea.sflag [#allocation3], 1
    %739 = vsyncpa %s738, 1
    %740 = vsyncpa [#allocation6], 1
    %741 = vsyncpa [#allocation4], 1
    %s742 = scalar_lea.sflag [#allocation4], 1
    %743 = vsyncpa %s742, 1

</llo_original>
